<compile_context>
chip_gen: v6e
topology: v6e:2x2x1
jax: 0.10.0
libtpu: 0.0.40
codegen_flags: <defaults>
</compile_context>

<pallas_src>
import functools

import jax
import jax.numpy as jnp
from jax.experimental import pallas as pl
from jax.experimental.pallas import tpu as pltpu

BN_EPS = 1e-5
LEAKY_SLOPE = 0.2
# Comfortably above the ~18 MiB stage-3 footprint at tile_b=2048, below v7x's
# 64 MiB physical VMEM and well below v5e/v6e's 128 MiB.
VMEM_LIMIT_BYTES = 48 * 1024 * 1024


# ----------------------------------------------------------------------------
# Kernel helpers
# ----------------------------------------------------------------------------
def _leaky_relu(h):
    return jnp.where(h >= 0, h, LEAKY_SLOPE * h)


def _bn_scale_shift(stats_ref, gamma_ref, beta_ref, inv_b):
    """Fold train-mode BatchNorm into per-feature scale/shift rows ([1, N]).

    stats_ref holds per-core partial (sum, sumsq) slabs of shape
    (num_cores, 2, N); they are combined here.
    """
    stats = jnp.sum(stats_ref[...], axis=0)                    # (2, N)
    mu = stats[0:1, :] * inv_b                                  # E[x]
    var = jnp.maximum(stats[1:2, :] * inv_b - mu * mu, 0.0)    # biased var, clamped
    scale = gamma_ref[...] * jax.lax.rsqrt(var + BN_EPS)       # rsqrt -> EUP
    shift = beta_ref[...] - mu * scale
    return scale, shift


def _accumulate_stats(stats_ref, h, step):
    """Accumulate per-feature sum / sum-of-squares into this core's slab."""
    @pl.when(step == 0)
    def _():
        stats_ref[...] = jnp.zeros_like(stats_ref)

    # Two direct row accumulations (no cross-sublane concatenate).
    stats_ref[0, 0:1, :] += jnp.sum(h, axis=0, keepdims=True)
    stats_ref[0, 1:2, :] += jnp.sum(h * h, axis=0, keepdims=True)


# ----------------------------------------------------------------------------
# Stage kernels
# ----------------------------------------------------------------------------
def stage1_kernel(z_ref, w1_ref, stats1_ref):
    # Linear 1 (bias dropped: cancelled by BN mean subtraction), bf16 MXU.
    t = pl.program_id(1)
    h1 = jnp.dot(z_ref[...], w1_ref[...], preferred_element_type=jnp.float32)
    _accumulate_stats(stats1_ref, h1, t)


def stage2_kernel(z_ref, stats1_ref, g1_ref, be1_ref, w1_ref, w2_ref,
                  stats2_ref, *, inv_b):
    # Recompute h1 from z, BN1 + LeakyReLU, Linear 2 (bias dropped), stats 2.
    t = pl.program_id(1)
    h1 = jnp.dot(z_ref[...], w1_ref[...], preferred_element_type=jnp.float32)
    s1, sh1 = _bn_scale_shift(stats1_ref, g1_ref, be1_ref, inv_b)
    a1 = _leaky_relu(h1 * s1 + sh1)
    h2 = jnp.dot(a1.astype(jnp.bfloat16), w2_ref[...],
                 preferred_element_type=jnp.float32)
    _accumulate_stats(stats2_ref, h2, t)


def stage3_kernel(z_ref, stats1_ref, stats2_ref, g1_ref, be1_ref, g2_ref,
                  be2_ref, w1_ref, w2_ref, w3_ref, b3_ref, out_ref, *, inv_b):
    # Recompute h1, h2; BN2 + LeakyReLU + Linear 3 (+ b3) + tanh.
    h1 = jnp.dot(z_ref[...], w1_ref[...], preferred_element_type=jnp.float32)
    s1, sh1 = _bn_scale_shift(stats1_ref, g1_ref, be1_ref, inv_b)
    a1 = _leaky_relu(h1 * s1 + sh1)
    h2 = jnp.dot(a1.astype(jnp.bfloat16), w2_ref[...],
                 preferred_element_type=jnp.float32)
    s2, sh2 = _bn_scale_shift(stats2_ref, g2_ref, be2_ref, inv_b)
    a2 = _leaky_relu(h2 * s2 + sh2)
    y = jnp.dot(a2.astype(jnp.bfloat16), w3_ref[...],
                preferred_element_type=jnp.float32) + b3_ref[...]
    # TODO(synk): a bf16 tanh would double EUP throughput on v6e/v7x, but v5e
    # has no bf16 EUP; keep f32 until profiles show stage 3 is EUP-bound.
    out_ref[...] = jnp.tanh(y)


# ----------------------------------------------------------------------------
# Parameter prep + wrapper
# ----------------------------------------------------------------------------
def prepare_generator_params(params):
    """One-time prep: bf16 weights, f32 BN rows.  Call once, reuse per step.

    b1/b2 are dropped: with train-mode BatchNorm the mean subtraction exactly
    cancels a constant per-feature bias.  (If eval-mode running stats are ever
    used, re-add them.)
    """
    (w1, _b1, g1, be1, w2, _b2, g2, be2, w3, b3) = params
    row = lambda p: jnp.asarray(p, jnp.float32).reshape(1, -1)
    return dict(
        w1=jnp.asarray(w1, jnp.bfloat16),
        w2=jnp.asarray(w2, jnp.bfloat16),
        w3=jnp.asarray(w3, jnp.bfloat16),
        g1=row(g1), be1=row(be1), g2=row(g2), be2=row(be2), b3=row(b3),
    )


def generator_forward(z, prep, *, tile_b=2048):
    """Forward pass of the WGAN-GP Generator (train-mode BatchNorm)."""
    w1, w2, w3 = prep["w1"], prep["w2"], prep["w3"]
    g1, be1, g2, be2, b3 = (prep["g1"], prep["be1"], prep["g2"], prep["be2"],
                            prep["b3"])

    B, d_in = z.shape
    h1_dim = w1.shape[1]      # 256
    h2_dim = w2.shape[1]      # 512
    out_dim = w3.shape[1]

    tile_b = min(tile_b, B)
    assert tile_b % 8 == 0, "tile_b must be a multiple of 8 (sublane)"
    # TODO(synk): no ragged-batch path; pad the batch outside if needed.
    assert B % tile_b == 0, "batch must be divisible by tile_b"
    num_tiles = B // tile_b
    # v7x has 2 TensorCores; give each its own partial-stats slab when the
    # tile count splits evenly (no effect on v5e/v6e beyond an extra tiny sum).
    num_cores = 2 if num_tiles % 2 == 0 else 1
    tiles_per_core = num_tiles // num_cores
    inv_b = 1.0 / B

    z_bf = z.astype(jnp.bfloat16)   # only per-call cast; weights prepared once

    def cparams(sem):
        return pltpu.CompilerParams(dimension_semantics=sem,
                                    vmem_limit_bytes=VMEM_LIMIT_BYTES)

    # Specs for the 2-D (core, tile) grid of stages 1-2.
    w_spec2 = lambda shape: pl.BlockSpec(shape, lambda c, t: (0, 0))
    z_spec2 = pl.BlockSpec((tile_b, d_in),
                           lambda c, t: (c * tiles_per_core + t, 0))
    stats_out = lambda n: pl.BlockSpec((1, 2, n), lambda c, t: (c, 0, 0))
    stats_in2 = lambda n: pl.BlockSpec((num_cores, 2, n),
                                       lambda c, t: (0, 0, 0))
    grid2 = (num_cores, tiles_per_core)
    sem2 = ("parallel", "arbitrary")

    # ---- stage 1: layer-1 batch statistics ----------------------------------
    stats1 = pl.pallas_call(
        stage1_kernel,
        out_shape=jax.ShapeDtypeStruct((num_cores, 2, h1_dim), jnp.float32),
        grid=grid2,
        in_specs=[z_spec2, w_spec2((d_in, h1_dim))],
        out_specs=stats_out(h1_dim),
        compiler_params=cparams(sem2),
    )(z_bf, w1)

    # ---- stage 2: BN1 + LeakyReLU + Linear 2 -> layer-2 statistics ----------
    stats2 = pl.pallas_call(
        functools.partial(stage2_kernel, inv_b=inv_b),
        out_shape=jax.ShapeDtypeStruct((num_cores, 2, h2_dim), jnp.float32),
        grid=grid2,
        in_specs=[z_spec2,
                  stats_in2(h1_dim),
                  w_spec2((1, h1_dim)), w_spec2((1, h1_dim)),
                  w_spec2((d_in, h1_dim)), w_spec2((h1_dim, h2_dim))],
        out_specs=stats_out(h2_dim),
        compiler_params=cparams(sem2),
    )(z_bf, stats1, g1, be1, w1, w2)

    # ---- stage 3: full recompute + BN2 + LeakyReLU + Linear 3 + tanh --------
    w_spec1 = lambda shape: pl.BlockSpec(shape, lambda i: (0, 0))
    stats_in1 = lambda n: pl.BlockSpec((num_cores, 2, n), lambda i: (0, 0, 0))
    out = pl.pallas_call(
        functools.partial(stage3_kernel, inv_b=inv_b),
        out_shape=jax.ShapeDtypeStruct((B, out_dim), jnp.float32),
        grid=(num_tiles,),
        in_specs=[pl.BlockSpec((tile_b, d_in), lambda i: (i, 0)),
                  stats_in1(h1_dim), stats_in1(h2_dim),
                  w_spec1((1, h1_dim)), w_spec1((1, h1_dim)),
                  w_spec1((1, h2_dim)), w_spec1((1, h2_dim)),
                  w_spec1((d_in, h1_dim)), w_spec1((h1_dim, h2_dim)),
                  w_spec1((h2_dim, out_dim)), w_spec1((1, out_dim))],
        out_specs=pl.BlockSpec((tile_b, out_dim), lambda i: (i, 0)),
        compiler_params=cparams(("parallel",)),
    )(z_bf, stats1, stats2, g1, be1, g2, be2, w1, w2, w3, b3)

    return out


# ----------------------------------------------------------------------------
# Params + pure-JAX reference
# ----------------------------------------------------------------------------
def init_generator_params(key, input_dim, output_dim):
    """Deterministic synthetic init matching the PyTorch module's shapes."""
    ks = jax.random.split(key, 6)

    def linear(kw, kb, fan_in, fan_out):
        w = jax.random.normal(kw, (fan_in, fan_out), jnp.float32) / jnp.sqrt(fan_in)
        b = jax.random.normal(kb, (1, fan_out), jnp.float32) * 0.01
        return w, b

    w1, b1 = linear(ks[0], ks[1], input_dim, 256)
    w2, b2 = linear(ks[2], ks[3], 256, 512)
    w3, b3 = linear(ks[4], ks[5], 512, output_dim)

    g1, be1 = jnp.ones((1, 256), jnp.float32), jnp.zeros((1, 256), jnp.float32)
    g2, be2 = jnp.ones((1, 512), jnp.float32), jnp.zeros((1, 512), jnp.float32)

    return (w1, b1, g1, be1, w2, b2, g2, be2, w3, b3)


def reference_forward(z, params):
    """Pure-JAX reference (includes b1/b2; validates the BN-cancellation)."""
    (w1, b1, g1, be1, w2, b2, g2, be2, w3, b3) = params

    def bn(h, g, be):
        mu = jnp.mean(h, axis=0, keepdims=True)
        var = jnp.mean((h - mu) ** 2, axis=0, keepdims=True)
        return (h - mu) * jax.lax.rsqrt(var + BN_EPS) * g + be

    h = jnp.dot(z.astype(jnp.bfloat16), w1.astype(jnp.bfloat16),
                preferred_element_type=jnp.float32) + b1
    h = _leaky_relu(bn(h, g1, be1))
    h = jnp.dot(h.astype(jnp.bfloat16), w2.astype(jnp.bfloat16),
                preferred_element_type=jnp.float32) + b2
    h = _leaky_relu(bn(h, g2, be2))
    y = jnp.dot(h.astype(jnp.bfloat16), w3.astype(jnp.bfloat16),
                preferred_element_type=jnp.float32) + b3
    return jnp.tanh(y)


# ----------------------------------------------------------------------------
if __name__ == "__main__":
    INPUT_DIM = 32     # noise dimension
    OUTPUT_DIM = 64    # generated-data dimension
    BATCH = 64         # small demo batch; tiled into 2 grid steps below
    TILE_B = 32

    key = jax.random.PRNGKey(0)
    kz, kp = jax.random.split(key)
    z = jax.random.normal(kz, (BATCH, INPUT_DIM), jnp.float32)
    raw_params = init_generator_params(kp, INPUT_DIM, OUTPUT_DIM)
    prep = prepare_generator_params(raw_params)   # one-time param prep

    out = generator_forward(z, prep, tile_b=TILE_B)
    out = jax.block_until_ready(out)

    ref = reference_forward(z, raw_params)
    assert out.shape == (BATCH, OUTPUT_DIM)
    assert jnp.allclose(out, ref, atol=2e-3, rtol=2e-3), float(
        jnp.max(jnp.abs(out - ref)))

    print("KERNEL_OK")
</pallas_src>

<mosaic_0001>
module attributes {stable_mosaic.version = 11 : i64} {
  func.func @stage1_kernel(%arg0: i32, %arg1: i32, %arg2: memref<32x32xbf16, #tpu.memory_space<vmem>>, %arg3: memref<32x256xbf16, #tpu.memory_space<vmem>>, %arg4: memref<1x2x256xf32, #tpu.memory_space<vmem>>) attributes {dimension_semantics = [#tpu.dimension_semantics<parallel>, #tpu.dimension_semantics<arbitrary>], iteration_bounds = array<i64: 2, 1>, scalar_prefetch = 0 : i64, scratch_operands = 0 : i64, tpu.core_type = #tpu.core_type<tc>, window_params = [{transform_indices = @transform_0, window_bounds = array<i64: 32, 32>}, {pipeline_mode = #tpu.pipeline_mode<synchronous>, transform_indices = @transform_1, window_bounds = array<i64: 32, 256>}, {transform_indices = @transform_2, window_bounds = array<i64: 1, 2, 256>}]} {
    %c0 = arith.constant 0 : index
    %c0_0 = arith.constant 0 : index
    %0 = vector.load %arg2[%c0, %c0_0] : memref<32x32xbf16, #tpu.memory_space<vmem>>, vector<32x32xbf16>
    %c0_1 = arith.constant 0 : index
    %c0_2 = arith.constant 0 : index
    %1 = vector.load %arg3[%c0_1, %c0_2] : memref<32x256xbf16, #tpu.memory_space<vmem>>, vector<32x256xbf16>
    %cst = arith.constant dense<0.000000e+00> : vector<32x256xf32>
    %2 = tpu.matmul %0, %1, %cst {dimension_numbers = #tpu.dot_dimension_numbers<[1], [0], [0], [1], [0, 0, 1, 1], [], []>} : vector<32x32xbf16>, vector<32x256xbf16>, vector<32x256xf32> -> vector<32x256xf32>
    %c0_i32 = arith.constant 0 : i32
    %3 = arith.cmpi eq, %arg1, %c0_i32 : i32
    %4 = arith.extui %3 : i1 to i32
    %c0_i32_3 = arith.constant 0 : i32
    %5 = arith.cmpi ne, %4, %c0_i32_3 : i32
    scf.if %5 {
      %cst_17 = arith.constant 0.000000e+00 : f32
      %23 = vector.broadcast %cst_17 : f32 to vector<1x2x256xf32>
      %c0_18 = arith.constant 0 : index
      %c0_19 = arith.constant 0 : index
      %c0_20 = arith.constant 0 : index
      %24 = vector.load %arg4[%c0_18, %c0_19, %c0_20] : memref<1x2x256xf32, #tpu.memory_space<vmem>>, vector<1x2x256xf32>
      tpu.vector_store %arg4[%c0_18, %c0_19, %c0_20], %23 {strides = array<i32>} : memref<1x2x256xf32, #tpu.memory_space<vmem>>, vector<1x2x256xf32>,
    } else {
    }
    %c0_4 = arith.constant 0 : index
    %c0_5 = arith.constant 0 : index
    %c0_6 = arith.constant 0 : index
    %6 = vector.load %arg4[%c0_4, %c0_5, %c0_6] : memref<1x2x256xf32, #tpu.memory_space<vmem>>, vector<1x1x256xf32>
    %7 = vector.shape_cast %6 : vector<1x1x256xf32> to vector<1x256xf32>
    %cst_7 = arith.constant dense<0.000000e+00> : vector<256xf32>
    %8 = vector.multi_reduction <add>, %2, %cst_7 [0] : vector<32x256xf32> to vector<256xf32>
    %9 = vector.shape_cast %8 : vector<256xf32> to vector<1x256xf32>
    %10 = arith.addf %7, %9 : vector<1x256xf32>
    %c0_8 = arith.constant 0 : index
    %c0_9 = arith.constant 0 : index
    %c0_10 = arith.constant 0 : index
    %11 = vector.load %arg4[%c0_8, %c0_9, %c0_10] : memref<1x2x256xf32, #tpu.memory_space<vmem>>, vector<1x1x256xf32>
    %12 = vector.shape_cast %11 : vector<1x1x256xf32> to vector<1x256xf32>
    %13 = vector.shape_cast %10 : vector<1x256xf32> to vector<1x1x256xf32>
    tpu.vector_store %arg4[%c0_8, %c0_9, %c0_10], %13 {strides = array<i32>} : memref<1x2x256xf32, #tpu.memory_space<vmem>>, vector<1x1x256xf32>,
    %c0_11 = arith.constant 0 : index
    %c1 = arith.constant 1 : index
    %c0_12 = arith.constant 0 : index
    %14 = vector.load %arg4[%c0_11, %c1, %c0_12] : memref<1x2x256xf32, #tpu.memory_space<vmem>>, vector<1x1x256xf32>
    %15 = vector.shape_cast %14 : vector<1x1x256xf32> to vector<1x256xf32>
    %16 = arith.mulf %2, %2 : vector<32x256xf32>
    %cst_13 = arith.constant dense<0.000000e+00> : vector<256xf32>
    %17 = vector.multi_reduction <add>, %16, %cst_13 [0] : vector<32x256xf32> to vector<256xf32>
    %18 = vector.shape_cast %17 : vector<256xf32> to vector<1x256xf32>
    %19 = arith.addf %15, %18 : vector<1x256xf32>
    %c0_14 = arith.constant 0 : index
    %c1_15 = arith.constant 1 : index
    %c0_16 = arith.constant 0 : index
    %20 = vector.load %arg4[%c0_14, %c1_15, %c0_16] : memref<1x2x256xf32, #tpu.memory_space<vmem>>, vector<1x1x256xf32>
    %21 = vector.shape_cast %20 : vector<1x1x256xf32> to vector<1x256xf32>
    %22 = vector.shape_cast %19 : vector<1x256xf32> to vector<1x1x256xf32>
    tpu.vector_store %arg4[%c0_14, %c1_15, %c0_16], %22 {strides = array<i32>} : memref<1x2x256xf32, #tpu.memory_space<vmem>>, vector<1x1x256xf32>,
    return
  }
  func.func @transform_0(%arg0: i32, %arg1: i32) -> (i32, i32) {
    %c1_i32 = arith.constant 1 : i32
    %0 = arith.muli %arg0, %c1_i32 : i32
    %1 = arith.addi %0, %arg1 : i32
    %c0_i32 = arith.constant 0 : i32
    %c0_i32_0 = arith.constant 0 : i32
    return %1, %c0_i32 : i32, i32
  }
  func.func @transform_1(%arg0: i32, %arg1: i32) -> (i32, i32) {
    %c0_i32 = arith.constant 0 : i32
    %c0_i32_0 = arith.constant 0 : i32
    %c0_i32_1 = arith.constant 0 : i32
    return %c0_i32, %c0_i32_0 : i32, i32
  }
  func.func @transform_2(%arg0: i32, %arg1: i32) -> (i32, i32, i32) {
    %c0_i32 = arith.constant 0 : i32
    %c0_i32_0 = arith.constant 0 : i32
    %c0_i32_1 = arith.constant 0 : i32
    return %arg0, %c0_i32, %c0_i32_0 : i32, i32, i32
  }
}

</mosaic_0001>

<llo_original>
// kernel: tpu_custom_call.1
$region0: #{tpu_custom_call.1}
  #allocation0 [shape = 'u32[]', space=smem, size = 0x4, offset = 0x4, fixed_abs, tag = 'smem constant byte address 0x4 - core index']
  #allocation1 [shape = 'u32[144,128]{1,0:T(1,128)}', space=vmem, size = 0x12000, scoped, tag = 'internal scratch']
  %s0 = inlined_call_operand.vmem [shape: bf16[64,32], index: 0, kind: input, shape index: {}]
  %s1 = inlined_call_operand.vmem [shape: bf16[32,256], index: 1, kind: input, shape index: {}]
  %s2 = inlined_call_operand.hbm [shape: f32[2,2,256], index: 2, kind: output, shape index: {}]
  %s3 = sld [smem:[#allocation0]]
  $region45: #{tpu_custom_call.1} parent=0
    _
  %s5 = ssub.s32 1, %s3
  %s6 = scalar_select 0, %s5, %s3
  $region1: #{tpu_custom_call.1} parent=0
    #allocation2 [shape = 'u8[4096]{0}', space=vmem, size = 0x1000, scoped, tag = 'output window, operand 0']
    #allocation3 [shape = 's32[2]{0}', space=sflag, size = 0x8, scoped, tag = 'scoped memory for tpu_custom_call.1']
    %7 = vsyncpa [#allocation3], 0
    %s8 = scalar_lea.sflag [#allocation3], 1
    %9 = vsyncpa %s8, 0
    loop: start=0, step=1, limit=4
    $region2: #{tpu_custom_call.1} parent=1 // loop_pre_header
      _
    $region3: #{tpu_custom_call.1} parent=1 // loop_header
      %s11 = sphi 0, %s15
      %p12 = scmp.ge.s32.totalorder %s11, 4
      %s18 = sphi 0, %s30
      %s19 = sphi 0, %s26
      %s20 = sphi 0, %s18
      %s21 = sphi 0, %s19
      %s22 = sphi 0, %s20
      %s23 = sphi 0, %s21
      %s35 = sphi 0, %s37
      %s38 = sphi 0, %s35
      %s39 = sphi 0, %s38
      %s55 = sphi 0, %s39
      %s59 = sphi 0, %s59
      %s61 = sphi 0, %s59
      %s62 = sphi 0, %s61
      %s76 = sphi 0, %s62
      %s82 = sphi 0, %s84
      %s85 = sphi 0, %s82
      %s86 = sphi 0, %s85
      %s102 = sphi 0, %s86
    $region4: #{tpu_custom_call.1} parent=1 // loop_header_branch
      %14 = sbr.rel (%p12) target = $region8
    $region5: #{tpu_custom_call.1} parent=1 // loop_body
      %s16 = ssub.s32 %s11, 1
      %s17 = ssub.s32 %s11, 2
      %s24 = sadd.s32 1, %s19
      %p25 = scmp.ge.s32.totalorder %s24, 1
      %s26 = scalar_select %p25, 0, %s24
      %s27 = sadd.s32 1, %s18
      %s28 = scalar_select %p25, %s27, %s18
      %p29 = scmp.ge.s32.totalorder %s28, 2
      %s30 = scalar_select %p29, 0, %s28
      %s31 = sadd.s32 %s18, %s19
      %s32 = sadd.s32 %s30, %s26
      %s33 = ssub.s32 %s31, %s32
      %p34 = scmp.eq.s32.totalorder %s33, 0
      %s36 = sadd.s32 %s35, 1
      %s37 = scalar_select %p34, %s35, %s36
      %p40 = pneg %p34
      %p41 = scmp.eq.s32.totalorder %s11, 1
      %p42 = por %p40, %p41
      %p43 = scmp.ne.s32.totalorder %s35, %s38
      %p44 = scmp.eq.s32.totalorder %s11, 0
      %p45 = por %p43, %p44
      %p46 = scmp.ne.s32.totalorder %s35, %s38
      %p47 = scmp.eq.s32.totalorder %s16, 1
      %p48 = por %p46, %p47
      %p49 = scmp.ne.s32.totalorder %s38, %s39
      %p50 = scmp.eq.s32.totalorder %s16, 0
      %p51 = por %p49, %p50
      %p52 = scmp.ne.s32.totalorder %s38, %s39
      %p53 = scmp.eq.s32.totalorder %s17, 1
      %p54 = por %p52, %p53
      %p56 = scmp.ne.s32.totalorder %s39, %s55
      %p57 = scmp.eq.s32.totalorder %s17, 0
      %p58 = por %p56, %p57
      %s60 = sadd.s32 %s59, 1
      %p63 = scmp.eq.s32.totalorder %s11, 1
      %p64 = scmp.ne.s32.totalorder %s59, %s61
      %p65 = scmp.eq.s32.totalorder %s11, 0
      %p66 = por %p64, %p65
      %p67 = scmp.ne.s32.totalorder %s59, %s61
      %p68 = scmp.eq.s32.totalorder %s16, 1
      %p69 = por %p67, %p68
      %p70 = scmp.ne.s32.totalorder %s61, %s62
      %p71 = scmp.eq.s32.totalorder %s16, 0
      %p72 = por %p70, %p71
      %p73 = scmp.ne.s32.totalorder %s61, %s62
      %p74 = scmp.eq.s32.totalorder %s17, 1
      %p75 = por %p73, %p74
      %p77 = scmp.ne.s32.totalorder %s62, %s76
      %p78 = scmp.eq.s32.totalorder %s17, 0
      %p79 = por %p77, %p78
      %s80 = ssub.s32 %s18, %s30
      %p81 = scmp.eq.s32.totalorder %s80, 0
      %s83 = sadd.s32 %s82, 1
      %s84 = scalar_select %p81, %s82, %s83
      %p87 = pneg %p81
      %p88 = scmp.eq.s32.totalorder %s11, 1
      %p89 = por %p87, %p88
      %p90 = scmp.ne.s32.totalorder %s82, %s85
      %p91 = scmp.eq.s32.totalorder %s11, 0
      %p92 = por %p90, %p91
      %p93 = scmp.ne.s32.totalorder %s82, %s85
      %p94 = scmp.eq.s32.totalorder %s16, 1
      %p95 = por %p93, %p94
      %p96 = scmp.ne.s32.totalorder %s85, %s86
      %p97 = scmp.eq.s32.totalorder %s16, 0
      %p98 = por %p96, %p97
      %p99 = scmp.ne.s32.totalorder %s85, %s86
      %p100 = scmp.eq.s32.totalorder %s17, 1
      %p101 = por %p99, %p100
      %p103 = scmp.ne.s32.totalorder %s86, %s102
      %p104 = scmp.eq.s32.totalorder %s17, 0
      %p105 = por %p103, %p104
      %p106 = scmp.le.s32.totalorder 1, %s11
      %p107 = scmp.lt.s32.totalorder %s11, 3
      %p108 = pnand %p106, %p107
      %p109 = pneg %p108
      // Predicated region
      $region9: #{tpu_custom_call.1} parent=5 // pred_check
        _
      $region10: #{tpu_custom_call.1} parent=5 // pred_check_branch
        %111 = sbr.rel (%p108) target = $region12
      $region11: #{tpu_custom_call.1} parent=5 // pred_region
        %s112 = ssub.s32 %s11, 1
        // Predicated region
        $region13: #{tpu_custom_call.1} parent=11 // pred_check
          %p113 = pneg %p72
        $region14: #{tpu_custom_call.1} parent=11 // pred_check_branch
          %115 = sbr.rel (%p113) target = $region16
        $region15: #{tpu_custom_call.1} parent=11 // pred_region
          _
        $region16: #{tpu_custom_call.1} parent=11 // pred_fallthru
          _
      $region12: #{tpu_custom_call.1} parent=5 // pred_fallthru
        _
      %p116 = scmp.lt.s32.totalorder %s11, 2
      // Predicated region
      $region17: #{tpu_custom_call.1} parent=5 // pred_check
        %p117 = pneg %p116
      $region18: #{tpu_custom_call.1} parent=5 // pred_check_branch
        %119 = sbr.rel (%p117) target = $region20
      $region19: #{tpu_custom_call.1} parent=5 // pred_region
        // Predicated region
        $region21: #{tpu_custom_call.1} parent=19 // pred_check
          %p120 = pneg %p45
        $region22: #{tpu_custom_call.1} parent=19 // pred_check_branch
          %122 = sbr.rel (%p120) target = $region24
        $region23: #{tpu_custom_call.1} parent=19 // pred_region
          %s123 = sadd.s32 %s18, %s19
          %s124 = smul.u32 4, %s123
          %p125 = scmp.lt.s32.totalorder %s124, 7
          %s126 = scalar_select %p125, %s124, 7
          %s127 = smul.addr %s126, 4
          %s128 = scalar_lea.vmem %s0, %s127
          %s129 = sadd.s32 %s18, %s19
          %s130 = smul.u32 4, %s129
        $region24: #{tpu_custom_call.1} parent=19 // pred_fallthru
          _
      $region20: #{tpu_custom_call.1} parent=5 // pred_fallthru
        _
      %p131 = scmp.le.s32.totalorder 1, %s11
      %p132 = scmp.lt.s32.totalorder %s11, 3
      %p133 = pnand %p131, %p132
      %p134 = pneg %p133
      // Predicated region
      $region25: #{tpu_custom_call.1} parent=5 // pred_check
        _
      $region26: #{tpu_custom_call.1} parent=5 // pred_check_branch
        %136 = sbr.rel (%p133) target = $region28
      $region27: #{tpu_custom_call.1} parent=5 // pred_region
        %s137 = ssub.s32 %s11, 1
        %s138 = sadd.s32 %s20, %s21
        %s139 = smul.u32 4, %s138
        %p140 = scmp.lt.s32.totalorder %s139, 7
        %s141 = scalar_select %p140, %s139, 7
        %s142 = smul.addr %s141, 4
        %s143 = scalar_lea.vmem %s0, %s142
        %p144 = pneg %p51
        %p145 = pneg %p48
        %p146 = pneg %p72
        %p147 = pneg %p69
        %p148 = pneg %p98
        %p149 = pneg %p95
        %s150 = sand.u32 %s85, 1
        %s151 = scalar_lea.sflag [#allocation3], %s150
        %s152 = sand.u32 %s85, 1
        %s153 = smul.addr %s152, 4
        %s154 = scalar_lea.vmem [#allocation2], %s153
        %s155 = sadd.s32 %s20, %s21
        %s156 = smul.u32 4, %s155
        %p157 = scmp.lt.s32.totalorder %s156, 7
        %s158 = scalar_select %p157, %s156, 7
        %s159 = smul.addr %s158, 4
        %s160 = scalar_lea.vmem %s0, %s159
        %s161 = sadd.s32 %s20, %s21
        %s162 = smul.u32 4, %s161
        %v164 = vld [vmem:[%s160] sm:$0xf]
        %v165 = vld [vmem:[%s160 + $0x4] sm:$0xf]
        %v166 = vld [vmem:[%s160 + $0x8] sm:$0xf]
        %v167 = vld [vmem:[%s160 + $0xc] sm:$0xf]
        %v168 = vld [vmem:[%s1] sm:$0xff]
        %v169 = vld [vmem:[%s1 + $0x8] sm:$0xff]
        %v170 = vld [vmem:[%s1 + $0x10] sm:$0xff]
        %v171 = vld [vmem:[%s1 + $0x18] sm:$0xff]
        %v176 = vunpack.c.l.b16 %v164
        %v177 = vunpack.c.l.b16 %v165
        %v178 = vunpack.c.l.b16 %v166
        %v179 = vunpack.c.l.b16 %v167
        %v180 = vpack.c.b16 %v177, %v176
        %v181 = vpack.c.b16 %v179, %v178
        %v186 = vunpack.c.l.b16 %v168
        %v187 = vunpack.c.h.b16 %v168
        %v188 = vunpack.c.l.b16 %v169
        %v189 = vunpack.c.h.b16 %v169
        %v190 = vunpack.c.l.b16 %v170
        %v191 = vunpack.c.h.b16 %v170
        %v192 = vunpack.c.l.b16 %v171
        %v193 = vunpack.c.h.b16 %v171
        %v194 = vpack.c.b16 %v188, %v186
        %v195 = vpack.c.b16 %v189, %v187
        %v196 = vpack.c.b16 %v192, %v190
        %v197 = vpack.c.b16 %v193, %v191
        %vm202 = vcmask 261120
        %v204 = vsel %vm202, %v180, 0
        %v207 = vsel %vm202, %v181, 0
        %209 = vmatprep.subr.bf16.mxu0 0
        %210 = vmatpush1.bf16.msra.mxu0 0
        %211 = vmatprep.subr.bf16.mxu0 0
        %212 = vmatpush1.bf16.msra.mxu0 0
        %213 = vmatprep.subr.bf16.mxu0 0
        %214 = vmatpush1.bf16.msra.mxu0 0
        %215 = vmatprep.subr.bf16.mxu0 0
        %216 = vmatpush1.bf16.msra.mxu0 0
        %217 = vmatprep.subr.bf16.mxu0 0
        %218 = vmatpush1.bf16.msra.mxu0 0
        %219 = vmatprep.subr.bf16.mxu0 0
        %220 = vmatpush1.bf16.msra.mxu0 0
        %221 = vmatprep.subr.bf16.mxu0 %v197
        %222 = vmatpush1.bf16.msra.mxu0 %v196
        %223 = vmatprep.subr.bf16.mxu0 %v195
        %224 = vmatpush1.bf16.msra.mxu0 %v194
        %225 = vmatprep.subr.bf16.mxu0 0
        %226 = vmatpush2.bf16.msra.mxu0 0
        %227 = vmatprep.subr.bf16.mxu0 0
        %228 = vmatpush2.bf16.msra.mxu0 0
        %229 = vmatprep.subr.bf16.mxu0 0
        %230 = vmatpush2.bf16.msra.mxu0 0
        %231 = vmatprep.subr.bf16.mxu0 0
        %232 = vmatpush2.bf16.msra.mxu0 0
        %233 = vmatprep.subr.bf16.mxu0 0
        %234 = vmatpush2.bf16.msra.mxu0 0
        %235 = vmatprep.subr.bf16.mxu0 0
        %236 = vmatpush2.bf16.msra.mxu0 0
        %237 = vmatprep.subr.bf16.mxu0 0
        %238 = vmatpush2.bf16.msra.mxu0 0
        %239 = vmatprep.subr.bf16.mxu0 0
        %240 = vmatpush2.bf16.msra.mxu0 0
        %241 = vmatprep.mubr.bf16.mxu0 0
        %242 = vmatmul.mubr.bf16.gmra.mxu0 %v204
        %v243 = vpop.f32.mrf.mxu0
        %v244 = vadd.f32 0.0, %v243
        %v245 = vpop.f32.mrf.mxu0
        %v246 = vadd.f32 0.0, %v245
        %v247 = vpop.f32.mrf.mxu0
        %v248 = vadd.f32 0.0, %v247
        %v249 = vpop.f32.mrf.mxu0
        %v250 = vadd.f32 0.0, %v249
        %251 = vmatprep.mubr.bf16.mxu0 0
        %252 = vmatmul.mubr.bf16.gmra.mxu0 %v207
        %v253 = vpop.f32.mrf.mxu0
        %v254 = vadd.f32 0.0, %v253
        %v255 = vpop.f32.mrf.mxu0
        %v256 = vadd.f32 0.0, %v255
        %v257 = vpop.f32.mrf.mxu0
        %v258 = vadd.f32 0.0, %v257
        %v259 = vpop.f32.mrf.mxu0
        %v260 = vadd.f32 0.0, %v259
        %261 = vdwg.mxu0
        %p262 = scmp.eq.s32.totalorder %s21, 0
        // Predicated region
        $region29: #{tpu_custom_call.1} parent=27 // pred_check
          %p263 = pneg %p262
        $region30: #{tpu_custom_call.1} parent=27 // pred_check_branch
          %265 = sbr.rel (%p263) target = $region32
        $region31: #{tpu_custom_call.1} parent=27 // pred_region
          %266 = vst [vmem:[%s154] sm:$0xf] 0.0
        $region32: #{tpu_custom_call.1} parent=27 // pred_fallthru
          _
        %v267 = vld [vmem:[%s154] ss:$2 sm:$0x3]
        %v268 = vadd.f32 %v244, %v248
        %v269 = vadd.f32 %v268, %v254
        %v270 = vadd.f32 %v269, %v258
        %v271 = vrot.slane %v270, 4
        %v272 = vadd.f32 %v270, %v271
        %v273 = vrot.slane %v272, 2
        %v274 = vadd.f32 %v272, %v273
        %v275 = vrot.slane %v274, 1
        %v276 = vadd.f32 %v274, %v275
        %v277 = vadd.f32 %v246, %v250
        %v278 = vadd.f32 %v277, %v256
        %v279 = vadd.f32 %v278, %v260
        %v280 = vrot.slane %v279, 4
        %v281 = vadd.f32 %v279, %v280
        %v282 = vrot.slane %v281, 2
        %v283 = vadd.f32 %v281, %v282
        %v284 = vrot.slane %v283, 1
        %v285 = vadd.f32 %v283, %v284
        %v288 = vcombine.low %v276, %v285
        %v290 = vunpack.c.l.s4 1966171168
        %v291 = vunpack.c.0.s8 %v290
        %v292 = vlaneseq
        %v293 = vshrl.u32 %v292, 7
        %v294 = vsub.s32 %v291, %v293
        %v295 = vrot.slane %v288, %v294
        %v297 = vunpack.c.l.s4 1966171168
        %v298 = vunpack.c.0.s8 %v297
        %v299 = vlaneseq
        %v300 = vshrl.u32 %v299, 7
        %v301 = vsub.s32 %v298, %v300
        %v302 = vrot.slane %v295, %v301
        %v304 = vadd.f32 %v267, %v302
        %v305 = vlaneseq
        %vm306 = vcmp.ge.s32.totalorder %v305, 0
        %vm307 = vcmp.lt.s32.totalorder %v305, 256
        %vm308 = vmand %vm306, %vm307
        %309 = vst.msk [vmem:[%s154] ss:$2 sm:$0x3] %vm308, %v304
        %s310 = scalar_lea.vmem %s154, 1 [#allocation2]
        %v311 = vld [vmem:[%s310] ss:$2 sm:$0x3]
        %v312 = vmul.f32 %v244, %v244
        %v313 = vmul.f32 %v246, %v246
        %v314 = vmul.f32 %v248, %v248
        %v315 = vmul.f32 %v250, %v250
        %v316 = vmul.f32 %v254, %v254
        %v317 = vmul.f32 %v256, %v256
        %v318 = vmul.f32 %v258, %v258
        %v319 = vmul.f32 %v260, %v260
        %v320 = vadd.f32 %v312, %v314
        %v321 = vadd.f32 %v320, %v316
        %v322 = vadd.f32 %v321, %v318
        %v323 = vrot.slane %v322, 4
        %v324 = vadd.f32 %v322, %v323
        %v325 = vrot.slane %v324, 2
        %v326 = vadd.f32 %v324, %v325
        %v327 = vrot.slane %v326, 1
        %v328 = vadd.f32 %v326, %v327
        %v329 = vadd.f32 %v313, %v315
        %v330 = vadd.f32 %v329, %v317
        %v331 = vadd.f32 %v330, %v319
        %v332 = vrot.slane %v331, 4
        %v333 = vadd.f32 %v331, %v332
        %v334 = vrot.slane %v333, 2
        %v335 = vadd.f32 %v333, %v334
        %v336 = vrot.slane %v335, 1
        %v337 = vadd.f32 %v335, %v336
        %v340 = vcombine.low %v328, %v337
        %v342 = vunpack.c.l.s4 1966171168
        %v343 = vunpack.c.0.s8 %v342
        %v344 = vlaneseq
        %v345 = vshrl.u32 %v344, 7
        %v346 = vsub.s32 %v343, %v345
        %v347 = vrot.slane %v340, %v346
        %v349 = vunpack.c.l.s4 1966171168
        %v350 = vunpack.c.0.s8 %v349
        %v351 = vlaneseq
        %v352 = vshrl.u32 %v351, 7
        %v353 = vsub.s32 %v350, %v352
        %v354 = vrot.slane %v347, %v353
        %v356 = vadd.f32 %v311, %v354
        %357 = vst.msk [vmem:[%s310] ss:$2 sm:$0x3] %vm308, %v356
        %s358 = sand.u32 %s85, 1
        %s359 = scalar_lea.sflag [#allocation3], %s358
        %s360 = sand.u32 %s85, 1
        %s361 = smul.addr %s360, 4
        %s362 = scalar_lea.vmem [#allocation2], %s361
        // Predicated region
        $region33: #{tpu_custom_call.1} parent=27 // pred_check
          %p363 = pneg %p95
        $region34: #{tpu_custom_call.1} parent=27 // pred_check_branch
          %365 = sbr.rel (%p363) target = $region36
        $region35: #{tpu_custom_call.1} parent=27 // pred_region
          %s367 = ssub.s32 64, 64
          %368 = vsyncadd %s359, %s367
          %s369 = smul.addr %s20, 2
          %s370 = smul.addr %s369, 32
          %s371 = scalar_lea.hbm %s2, %s370
          %s373 = sshll.u32 %s362, 4
          %s374 = int_to_ptr.vmem [resolvable:$true] %s373
          %376 = dma.vmem_to_hbm [thread:$0]  %s374, 64, %s371, %s359
        $region36: #{tpu_custom_call.1} parent=27 // pred_fallthru
          _
      $region28: #{tpu_custom_call.1} parent=5 // pred_fallthru
        _
      %p377 = scmp.le.s32.totalorder 2, %s11
      // Predicated region
      $region37: #{tpu_custom_call.1} parent=5 // pred_check
        %p378 = pneg %p377
      $region38: #{tpu_custom_call.1} parent=5 // pred_check_branch
        %380 = sbr.rel (%p378) target = $region40
      $region39: #{tpu_custom_call.1} parent=5 // pred_region
        %s381 = ssub.s32 %s11, 2
        // Predicated region
        $region41: #{tpu_custom_call.1} parent=39 // pred_check
          %p382 = pneg %p101
        $region42: #{tpu_custom_call.1} parent=39 // pred_check_branch
          %384 = sbr.rel (%p382) target = $region44
        $region43: #{tpu_custom_call.1} parent=39 // pred_region
          %s385 = sand.u32 %s86, 1
          %s386 = scalar_lea.sflag [#allocation3], %s385
          %s387 = sand.u32 %s86, 1
          %s388 = smul.addr %s387, 4
          %s389 = scalar_lea.vmem [#allocation2], %s388
          %390 = dma.done %s386, 64
        $region44: #{tpu_custom_call.1} parent=39 // pred_fallthru
          _
      $region40: #{tpu_custom_call.1} parent=5 // pred_fallthru
        _
    $region6: #{tpu_custom_call.1} parent=1 // loop_footer
      %s15 = sadd.s32 1, %s11
    $region7: #{tpu_custom_call.1} parent=1 // loop_footer_branch
      %10 = sbr.rel target = $region3
    $region8: #{tpu_custom_call.1} parent=1 // loop_exit
      _
    %391 = vsyncpa [#allocation3], 1
    %s392 = scalar_lea.sflag [#allocation3], 1
    %393 = vsyncpa %s392, 1

</llo_original>
